<compile_context>
chip_gen: v7x
topology: tpu7x:2x2x1
jax: 0.10.0
libtpu: 0.0.40
codegen_flags: <defaults>
</compile_context>

<pallas_src>
import jax
import jax.numpy as jnp
from jax.experimental import pallas as pl
from jax.experimental.pallas import tpu as pltpu

_LANE = 128
_BLOCK_BYTES = 4 * 1024 * 1024        # ~4 MiB per block buffer
_VMEM_LIMIT_BYTES = 32 * 1024 * 1024  # safe on v5e/v6e (128 MiB) and v7x (64 MiB)
_MIN_GRID_STEPS = 4                   # keep enough steps for megacore sharding (v7x)


def _identity_kernel(x_ref, o_ref):
    # Pure copy of the current VMEM tile (minimal body that keeps the aliased
    # writeback well-defined).
    o_ref[...] = x_ref[...]


def _sublane_multiple(dtype) -> int:
    """Second-minor tile multiple: 8 for 4-byte, 16 for 2-byte, 32 for 1-byte."""
    itemsize = jnp.dtype(dtype).itemsize
    return max(8, 8 * (4 // max(itemsize, 1)))


def _round_down(x: int, m: int) -> int:
    return (x // m) * m


def _pick_layout(total: int):
    """Lane-dense 2D view (rows, cols): widest cols in {1024,...,128} dividing total."""
    for cols in (1024, 512, 256, 128):
        if total % cols == 0:
            return total // cols, cols
    return None  # caller pads


def _pick_block_rows(rows: int, cols: int, dtype) -> int:
    """Row tile bounded by the byte budget; never an unbounded full block for
    large tensors; keeps >= _MIN_GRID_STEPS grid steps when possible."""
    sub = _sublane_multiple(dtype)
    itemsize = jnp.dtype(dtype).itemsize
    budget_rows = max(sub, _round_down(_BLOCK_BYTES // (cols * itemsize), sub))
    if rows <= budget_rows:
        return rows  # small tensor: single full-extent block (legal, fits budget)
    block_rows = budget_rows
    # Cap so the grid has at least _MIN_GRID_STEPS steps (v7x: 2 TCs x pipeline).
    target = pl.cdiv(rows, _MIN_GRID_STEPS)
    if target < block_rows:
        block_rows = max(sub, _round_down(target, sub) or sub)
    return block_rows


def classifier_forward(x: jax.Array) -> jax.Array:
    """Classifier.forward — the identity. Optimal path: return x (no kernel)."""
    return x


def classifier_forward_pallas(x: jax.Array) -> jax.Array:
    """Pallas identity copy kept for API parity / future fused post-processing."""
    orig_shape = x.shape
    total = int(x.size)
    if total == 0:
        return x

    flat = x.reshape(total)
    layout = _pick_layout(total)
    pad = 0
    if layout is None:
        # Pad to a multiple of (sublane * 128) so the view stays lane-dense and
        # every store is a full unmasked vst; sliced back below.
        chunk = _sublane_multiple(x.dtype) * _LANE
        pad = (-total) % chunk
        flat = jnp.pad(flat, (0, pad))
        rows, cols = (total + pad) // _LANE, _LANE
    else:
        rows, cols = layout
    x2d = flat.reshape(rows, cols)

    block_rows = _pick_block_rows(rows, cols, x.dtype)
    grid = (pl.cdiv(rows, block_rows),)  # ragged final block handled by Pallas

    out2d = pl.pallas_call(
        _identity_kernel,
        out_shape=jax.ShapeDtypeStruct((rows, cols), x.dtype),
        grid=grid,
        in_specs=[pl.BlockSpec((block_rows, cols), lambda i: (i, 0))],
        out_specs=pl.BlockSpec((block_rows, cols), lambda i: (i, 0)),
        # Output aliases the input buffer: no second HBM allocation when the
        # caller donates the input (XLA inserts a protective copy otherwise).
        input_output_aliases={0: 0},
        compiler_params=pltpu.CompilerParams(
            dimension_semantics=("parallel",),
            vmem_limit_bytes=_VMEM_LIMIT_BYTES,
        ),
    )(x2d)

    out_flat = out2d.reshape(-1)
    if pad:
        out_flat = out_flat[:total]
    return out_flat.reshape(orig_shape)

# TODO(synk): if this kernel ever fuses non-trivial post-processing is dropped
# again, consider the chunked HBM->HBM make_async_copy variant (incompatible
# with input_output_aliases={0: 0}) to skip the VMEM round-trip entirely.


if __name__ == "__main__":
    key = jax.random.PRNGKey(0)
    # Small NCHW input consistent with a conv-style classifier input.
    x = jax.random.normal(key, (2, 4, 16, 16), dtype=jnp.float32)
    x_host = jax.device_get(x)  # reference values, immune to any aliasing

    # Optimal identity path (no kernel, no HBM traffic).
    y_fast = classifier_forward(x)
    assert y_fast is x

    # Pallas kernel path (exercised for verification).
    y = classifier_forward_pallas(x)
    y = jax.block_until_ready(y)

    assert y.shape == x_host.shape, (y.shape, x_host.shape)
    assert y.dtype == jnp.float32, y.dtype
    assert bool(jnp.all(y == jnp.asarray(x_host))), "identity kernel mismatch"

    print("KERNEL_OK")
</pallas_src>

<mosaic_0001>
module attributes {stable_mosaic.version = 11 : i64} {
  func.func @_identity_kernel(%arg0: i32, %arg1: memref<2x1024xf32, #tpu.memory_space<vmem>>, %arg2: memref<2x1024xf32, #tpu.memory_space<vmem>>) attributes {dimension_semantics = [#tpu.dimension_semantics<parallel>], iteration_bounds = array<i64: 1>, scalar_prefetch = 0 : i64, scratch_operands = 0 : i64, tpu.core_type = #tpu.core_type<tc>, window_params = [{transform_indices = @transform_0, window_bounds = array<i64: 2, 1024>}, {transform_indices = @transform_1, window_bounds = array<i64: 2, 1024>}]} {
    %c0 = arith.constant 0 : index
    %c0_0 = arith.constant 0 : index
    %0 = vector.load %arg1[%c0, %c0_0] : memref<2x1024xf32, #tpu.memory_space<vmem>>, vector<2x1024xf32>
    %c0_1 = arith.constant 0 : index
    %c0_2 = arith.constant 0 : index
    %1 = vector.load %arg2[%c0_1, %c0_2] : memref<2x1024xf32, #tpu.memory_space<vmem>>, vector<2x1024xf32>
    tpu.vector_store %arg2[%c0_1, %c0_2], %0 {strides = array<i32>} : memref<2x1024xf32, #tpu.memory_space<vmem>>, vector<2x1024xf32>,
    return
  }
  func.func @transform_0(%arg0: i32) -> (i32, i32) {
    %c0_i32 = arith.constant 0 : i32
    %c0_i32_0 = arith.constant 0 : i32
    return %arg0, %c0_i32 : i32, i32
  }
  func.func @transform_1(%arg0: i32) -> (i32, i32) {
    %c0_i32 = arith.constant 0 : i32
    %c0_i32_0 = arith.constant 0 : i32
    return %arg0, %c0_i32 : i32, i32
  }
}

</mosaic_0001>

<llo_original>
// kernel: tpu_custom_call.1
$region0: #{tpu_custom_call.1}
  #allocation0 [shape = 'u32[]', space=smem, size = 0x4, offset = 0x4, fixed_abs, tag = 'smem constant byte address 0x4 - core index']
  #allocation1 [shape = 'u32[144,128]{1,0:T(1,128)}', space=vmem, size = 0x12000, scoped, tag = 'internal scratch']
  %s0 = inlined_call_operand.hbm [shape: f32[2,1024], index: 0, kind: input, shape index: {}, may-alias: {0,1}]
  %s1 = inlined_call_operand.hbm [shape: f32[2,1024], index: 1, kind: output, shape index: {}, may-alias: {0,1}]
  %s2 = sld [smem:[#allocation0]]
  $region18: #{tpu_custom_call.1} parent=0
    _
  %s4 = ssub.s32 1, %s2
  %s5 = scalar_select 0, %s4, %s2
  $region1: #{tpu_custom_call.1} parent=0
    #allocation2 [shape = 'u8[8192]{0}', space=vmem, size = 0x2000, scoped, tag = 'input window, operand 0, single buffered']
    #allocation3 [shape = 's32[1]{0}', space=sflag, size = 0x4, scoped, tag = 'scoped memory for tpu_custom_call.1']
    #allocation4 [shape = 's32[1]{0}', space=sflag, size = 0x4, scoped, tag = 'scoped memory for tpu_custom_call.1']
    #allocation5 [shape = 'u8[8192]{0}', space=vmem, size = 0x2000, scoped, tag = 'output window, operand 0, single buffered']
    %6 = vsyncpa [#allocation3], 0
    %7 = vsyncpa [#allocation4], 0
    // Predicated region
    $region2: #{tpu_custom_call.1} parent=1 // pred_check
      _
    $region3: #{tpu_custom_call.1} parent=1 // pred_check_branch
      %9 = sbr.rel (0) target = $region5
    $region4: #{tpu_custom_call.1} parent=1 // pred_region
      %s11 = ssub.s32 256, 256
      %12 = vsyncadd [#allocation3], %s11
      %s14 = sshll.u32 [#allocation2], 4
      %s15 = int_to_ptr.vmem [resolvable:$true] %s14
      %17 = dma.hbm_to_vmem [thread:$0]  %s0, 256, %s15, [#allocation3]
    $region5: #{tpu_custom_call.1} parent=1 // pred_fallthru
      _
    // Predicated region
    $region6: #{tpu_custom_call.1} parent=1 // pred_check
      _
    $region7: #{tpu_custom_call.1} parent=1 // pred_check_branch
      %19 = sbr.rel (0) target = $region9
    $region8: #{tpu_custom_call.1} parent=1 // pred_region
      %20 = dma.done [#allocation3], 256
    $region9: #{tpu_custom_call.1} parent=1 // pred_fallthru
      _
    %v21 = vld [vmem:[#allocation2] sm:$0xff]
    %v22 = vld [vmem:[#allocation2 + $0x8] sm:$0xff]
    %23 = vst [vmem:[#allocation5] sm:$0xff] %v21
    %24 = vst [vmem:[#allocation5 + $0x8] sm:$0xff] %v22
    // Predicated region
    $region10: #{tpu_custom_call.1} parent=1 // pred_check
      _
    $region11: #{tpu_custom_call.1} parent=1 // pred_check_branch
      %26 = sbr.rel (0) target = $region13
    $region12: #{tpu_custom_call.1} parent=1 // pred_region
      %s28 = ssub.s32 256, 256
      %29 = vsyncadd [#allocation4], %s28
      %s31 = sshll.u32 [#allocation5], 4
      %s32 = int_to_ptr.vmem [resolvable:$true] %s31
      %34 = dma.vmem_to_hbm [thread:$0]  %s32, 256, %s1, [#allocation4]
    $region13: #{tpu_custom_call.1} parent=1 // pred_fallthru
      _
    // Predicated region
    $region14: #{tpu_custom_call.1} parent=1 // pred_check
      _
    $region15: #{tpu_custom_call.1} parent=1 // pred_check_branch
      %36 = sbr.rel (0) target = $region17
    $region16: #{tpu_custom_call.1} parent=1 // pred_region
      %37 = dma.done [#allocation4], 256
    $region17: #{tpu_custom_call.1} parent=1 // pred_fallthru
      _
    %38 = vsyncpa [#allocation3], 1
    %39 = vsyncpa [#allocation4], 1

</llo_original>
